<compile_context>
chip_gen: v6e
topology: v6e:2x2x1
jax: 0.10.0
libtpu: 0.0.40
codegen_flags: <defaults>
</compile_context>

<pallas_src>
import functools

import jax
import jax.numpy as jnp
from jax import lax
from jax.experimental import pallas as pl
from jax.experimental.pallas import tpu as pltpu


# ----------------------------------------------------------------------------
# Fused kernel: K-tiled encoder matmul accumulation + Barlow-Twins loss epilogue
# ----------------------------------------------------------------------------
def _fused_barlow_kernel(x_ref, obs_ref, w_ref, b_ref, o_ref, acc_ref, *,
                         lambda_coeff):
    k = pl.program_id(0)
    nk = pl.num_programs(0)

    @pl.when(k == 0)
    def _init():
        acc_ref[...] = jnp.zeros_like(acc_ref)

    # Encoder accumulation: bf16 MXU inputs, f32 VMEM-resident accumulator.
    acc_ref[...] += jnp.dot(
        obs_ref[...].astype(jnp.bfloat16),
        w_ref[...].astype(jnp.bfloat16),
        preferred_element_type=jnp.float32,
    )

    @pl.when(k == nk - 1)
    def _finalize():
        eps = jnp.float32(1e-5)  # F.batch_norm default eps
        p1 = x_ref[...].astype(jnp.float32)      # (N, D)
        p2 = acc_ref[...] + b_ref[...]           # bias added exactly once, here
        n = p1.shape[0]
        d = p1.shape[1]

        def batch_norm(p):
            # training-mode batch norm, no affine, biased variance (f32 VPU math)
            mean = jnp.mean(p, axis=0, keepdims=True)
            cent = p - mean
            var = jnp.mean(cent * cent, axis=0, keepdims=True)
            return cent * lax.rsqrt(var + eps)

        z1 = batch_norm(p1)
        z2 = batch_norm(p2)

        # c = z1.T @ z2 / N  -> contract over the batch axis, bf16 MXU inputs.
        c = lax.dot_general(
            z1.astype(jnp.bfloat16),
            z2.astype(jnp.bfloat16),
            dimension_numbers=(((0,), (0,)), ((), ())),
            preferred_element_type=jnp.float32,
        ) * jnp.float32(1.0 / n)

        row = lax.broadcasted_iota(jnp.int32, (d, d), 0)
        col = lax.broadcasted_iota(jnp.int32, (d, d), 1)
        is_diag = row == col

        # Single masked reduction:
        #   mean((diag(c)-1)^2) + lambda * mean(offdiag(c)^2)
        on_w = jnp.float32(1.0 / d)
        off_w = jnp.float32(lambda_coeff / (d * (d - 1)))
        dm1 = c - 1.0
        loss = jnp.sum(jnp.where(is_diag, dm1 * dm1 * on_w, c * c * off_w))
        o_ref[0, 0] = loss


# ----------------------------------------------------------------------------
# Forward: obs -> (transform = identity) -> linear encoder -> loss vs. x
# ----------------------------------------------------------------------------
def barlow_twins_forward(x, obs, enc_w, enc_b, lambda_coeff=0.01, *, tk=256):
    n = obs.shape[0]
    f = enc_w.shape[0]
    d = enc_w.shape[1]

    # Glue: flatten NCHW, cast matmul operands to bf16 (halves HBM/VMEM bytes).
    obs_flat = obs.reshape(n, -1).astype(jnp.bfloat16)
    w = enc_w.astype(jnp.bfloat16)
    b = enc_b.reshape(1, d).astype(jnp.float32)
    x = x.astype(jnp.float32)

    # Pad the contraction dim to a multiple of the K tile (zero columns/rows
    # contribute nothing to the matmul).
    f_pad = pl.cdiv(f, tk) * tk
    if f_pad != f:
        obs_flat = jnp.pad(obs_flat, ((0, 0), (0, f_pad - f)))
        w = jnp.pad(w, ((0, f_pad - f), (0, 0)))
    nk = f_pad // tk

    kernel = functools.partial(_fused_barlow_kernel, lambda_coeff=lambda_coeff)
    out = pl.pallas_call(
        kernel,
        out_shape=jax.ShapeDtypeStruct((1, 1), jnp.float32),
        grid_spec=pltpu.PrefetchScalarGridSpec(
            num_scalar_prefetch=0,
            grid=(nk,),
            in_specs=[
                pl.BlockSpec((n, d), lambda k: (0, 0)),    # x: resident across grid
                pl.BlockSpec((n, tk), lambda k: (0, k)),   # obs tile (pipelined)
                pl.BlockSpec((tk, d), lambda k: (k, 0)),   # weight tile (pipelined)
                pl.BlockSpec((1, d), lambda k: (0, 0)),    # bias: resident
            ],
            out_specs=pl.BlockSpec((1, 1), lambda k: (0, 0),
                                   memory_space=pltpu.MemorySpace.SMEM),
            scratch_shapes=[pltpu.VMEM((n, d), jnp.float32)],  # x_z accumulator
        ),
        compiler_params=pltpu.CompilerParams(
            dimension_semantics=("arbitrary",),
            vmem_limit_bytes=32 * 1024 * 1024,
        ),
    )(x, obs_flat, w, b)
    return out[0, 0]


if __name__ == "__main__":
    key = jax.random.PRNGKey(0)
    k1, k2, k3, k4 = jax.random.split(key, 4)

    N, C, H, W = 8, 4, 16, 16    # batch, channels, spatial
    D = 32                       # representation dim (toy; prod wants mult of 128)
    F_IN = C * H * W             # 1024

    x = jax.random.normal(k1, (N, D), dtype=jnp.float32)          # representations
    obs = jax.random.normal(k2, (N, C, H, W), dtype=jnp.float32)  # observations NCHW
    enc_w = jax.random.normal(k3, (F_IN, D), dtype=jnp.float32) * 0.02
    enc_b = jax.random.normal(k4, (1, D), dtype=jnp.float32) * 0.01

    loss = barlow_twins_forward(x, obs, enc_w, enc_b, lambda_coeff=0.01)
    jax.block_until_ready(loss)

    # Pure-JAX reference (mirrors the kernel's bf16 MXU precision).
    def ref_loss(x, obs, enc_w, enc_b, lam=0.01):
        n = obs.shape[0]
        obs_flat = obs.reshape(n, -1).astype(jnp.bfloat16)
        wq = enc_w.astype(jnp.bfloat16)
        x_z = jnp.dot(obs_flat, wq, preferred_element_type=jnp.float32)
        x_z = x_z + enc_b.reshape(1, -1)

        def bn(p):
            m = p.mean(0, keepdims=True)
            v = ((p - m) ** 2).mean(0, keepdims=True)
            return (p - m) / jnp.sqrt(v + 1e-5)

        z1 = bn(x.astype(jnp.float32))
        z2 = bn(x_z)
        c = jnp.dot(z1.astype(jnp.bfloat16).T, z2.astype(jnp.bfloat16),
                    preferred_element_type=jnp.float32) / n
        d = c.shape[0]
        on = jnp.mean((jnp.diag(c) - 1.0) ** 2)
        off = (jnp.sum(c ** 2) - jnp.sum(jnp.diag(c) ** 2)) / (d * (d - 1))
        return on + lam * off

    expected = ref_loss(x, obs, enc_w, enc_b)
    assert jnp.allclose(loss, expected, rtol=1e-2, atol=1e-3), (loss, expected)

    print("KERNEL_OK")
</pallas_src>

<mosaic_0001>
module attributes {stable_mosaic.version = 11 : i64} {
  func.func @_fused_barlow_kernel(%arg0: i32, %arg1: memref<8x32xf32, #tpu.memory_space<vmem>>, %arg2: memref<8x256xbf16, #tpu.memory_space<vmem>>, %arg3: memref<256x32xbf16, #tpu.memory_space<vmem>>, %arg4: memref<1x32xf32, #tpu.memory_space<vmem>>, %arg5: memref<1x1xf32, #tpu.memory_space<smem>>, %arg6: memref<8x32xf32, #tpu.memory_space<vmem>>) attributes {dimension_semantics = [#tpu.dimension_semantics<arbitrary>], iteration_bounds = array<i64: 4>, scalar_prefetch = 0 : i64, scratch_operands = 1 : i64, tpu.core_type = #tpu.core_type<tc>, window_params = [{pipeline_mode = #tpu.pipeline_mode<synchronous>, transform_indices = @transform_0, window_bounds = array<i64: 8, 32>}, {transform_indices = @transform_1, window_bounds = array<i64: 8, 256>}, {transform_indices = @transform_2, window_bounds = array<i64: 256, 32>}, {pipeline_mode = #tpu.pipeline_mode<synchronous>, transform_indices = @transform_3, window_bounds = array<i64: 1, 32>}, {transform_indices = @transform_4, window_bounds = array<i64: 1, 1>}]} {
    %c0_i32 = arith.constant 0 : i32
    %0 = arith.cmpi eq, %arg0, %c0_i32 : i32
    %1 = arith.extui %0 : i1 to i32
    %c0_i32_0 = arith.constant 0 : i32
    %2 = arith.cmpi ne, %1, %c0_i32_0 : i32
    scf.if %2 {
      %cst_9 = arith.constant 0.000000e+00 : f32
      %12 = vector.broadcast %cst_9 : f32 to vector<8x32xf32>
      %c0_10 = arith.constant 0 : index
      %c0_11 = arith.constant 0 : index
      %13 = vector.load %arg6[%c0_10, %c0_11] : memref<8x32xf32, #tpu.memory_space<vmem>>, vector<8x32xf32>
      tpu.vector_store %arg6[%c0_10, %c0_11], %12 {strides = array<i32>} : memref<8x32xf32, #tpu.memory_space<vmem>>, vector<8x32xf32>,
    } else {
    }
    %c0 = arith.constant 0 : index
    %c0_1 = arith.constant 0 : index
    %3 = vector.load %arg6[%c0, %c0_1] : memref<8x32xf32, #tpu.memory_space<vmem>>, vector<8x32xf32>
    %c0_2 = arith.constant 0 : index
    %c0_3 = arith.constant 0 : index
    %4 = vector.load %arg2[%c0_2, %c0_3] : memref<8x256xbf16, #tpu.memory_space<vmem>>, vector<8x256xbf16>
    %c0_4 = arith.constant 0 : index
    %c0_5 = arith.constant 0 : index
    %5 = vector.load %arg3[%c0_4, %c0_5] : memref<256x32xbf16, #tpu.memory_space<vmem>>, vector<256x32xbf16>
    %cst = arith.constant dense<0.000000e+00> : vector<8x32xf32>
    %6 = tpu.matmul %4, %5, %cst {dimension_numbers = #tpu.dot_dimension_numbers<[1], [0], [0], [1], [0, 0, 1, 1], [], []>} : vector<8x256xbf16>, vector<256x32xbf16>, vector<8x32xf32> -> vector<8x32xf32>
    %7 = arith.addf %3, %6 : vector<8x32xf32>
    %c0_6 = arith.constant 0 : index
    %c0_7 = arith.constant 0 : index
    %8 = vector.load %arg6[%c0_6, %c0_7] : memref<8x32xf32, #tpu.memory_space<vmem>>, vector<8x32xf32>
    tpu.vector_store %arg6[%c0_6, %c0_7], %7 {strides = array<i32>} : memref<8x32xf32, #tpu.memory_space<vmem>>, vector<8x32xf32>,
    %c3_i32 = arith.constant 3 : i32
    %9 = arith.cmpi eq, %arg0, %c3_i32 : i32
    %10 = arith.extui %9 : i1 to i32
    %c0_i32_8 = arith.constant 0 : i32
    %11 = arith.cmpi ne, %10, %c0_i32_8 : i32
    scf.if %11 {
      %c0_9 = arith.constant 0 : index
      %c0_10 = arith.constant 0 : index
      %12 = vector.load %arg1[%c0_9, %c0_10] : memref<8x32xf32, #tpu.memory_space<vmem>>, vector<8x32xf32>
      %c0_11 = arith.constant 0 : index
      %c0_12 = arith.constant 0 : index
      %13 = vector.load %arg6[%c0_11, %c0_12] : memref<8x32xf32, #tpu.memory_space<vmem>>, vector<8x32xf32>
      %c0_13 = arith.constant 0 : index
      %c0_14 = arith.constant 0 : index
      %14 = vector.load %arg4[%c0_13, %c0_14] : memref<1x32xf32, #tpu.memory_space<vmem>>, vector<1x32xf32>
      %15 = vector.broadcast %14 : vector<1x32xf32> to vector<8x32xf32>
      %16 = arith.addf %13, %15 : vector<8x32xf32>
      %cst_15 = arith.constant dense<0.000000e+00> : vector<32xf32>
      %17 = vector.multi_reduction <add>, %12, %cst_15 [0] : vector<8x32xf32> to vector<32xf32>
      %18 = vector.shape_cast %17 : vector<32xf32> to vector<1x32xf32>
      %cst_16 = arith.constant 8.000000e+00 : f32
      %19 = vector.broadcast %cst_16 : f32 to vector<1x32xf32>
      %20 = arith.divf %18, %19 : vector<1x32xf32>
      %21 = vector.broadcast %20 : vector<1x32xf32> to vector<8x32xf32>
      %22 = arith.subf %12, %21 : vector<8x32xf32>
      %23 = arith.mulf %22, %22 : vector<8x32xf32>
      %cst_17 = arith.constant dense<0.000000e+00> : vector<32xf32>
      %24 = vector.multi_reduction <add>, %23, %cst_17 [0] : vector<8x32xf32> to vector<32xf32>
      %25 = vector.shape_cast %24 : vector<32xf32> to vector<1x32xf32>
      %cst_18 = arith.constant 8.000000e+00 : f32
      %26 = vector.broadcast %cst_18 : f32 to vector<1x32xf32>
      %27 = arith.divf %25, %26 : vector<1x32xf32>
      %cst_19 = arith.constant 9.99999974E-6 : f32
      %28 = vector.broadcast %cst_19 : f32 to vector<1x32xf32>
      %29 = arith.addf %27, %28 : vector<1x32xf32>
      %30 = math.rsqrt %29 : vector<1x32xf32>
      %31 = vector.broadcast %30 : vector<1x32xf32> to vector<8x32xf32>
      %32 = arith.mulf %22, %31 : vector<8x32xf32>
      %cst_20 = arith.constant dense<0.000000e+00> : vector<32xf32>
      %33 = vector.multi_reduction <add>, %16, %cst_20 [0] : vector<8x32xf32> to vector<32xf32>
      %34 = vector.shape_cast %33 : vector<32xf32> to vector<1x32xf32>
      %cst_21 = arith.constant 8.000000e+00 : f32
      %35 = vector.broadcast %cst_21 : f32 to vector<1x32xf32>
      %36 = arith.divf %34, %35 : vector<1x32xf32>
      %37 = vector.broadcast %36 : vector<1x32xf32> to vector<8x32xf32>
      %38 = arith.subf %16, %37 : vector<8x32xf32>
      %39 = arith.mulf %38, %38 : vector<8x32xf32>
      %cst_22 = arith.constant dense<0.000000e+00> : vector<32xf32>
      %40 = vector.multi_reduction <add>, %39, %cst_22 [0] : vector<8x32xf32> to vector<32xf32>
      %41 = vector.shape_cast %40 : vector<32xf32> to vector<1x32xf32>
      %cst_23 = arith.constant 8.000000e+00 : f32
      %42 = vector.broadcast %cst_23 : f32 to vector<1x32xf32>
      %43 = arith.divf %41, %42 : vector<1x32xf32>
      %cst_24 = arith.constant 9.99999974E-6 : f32
      %44 = vector.broadcast %cst_24 : f32 to vector<1x32xf32>
      %45 = arith.addf %43, %44 : vector<1x32xf32>
      %46 = math.rsqrt %45 : vector<1x32xf32>
      %47 = vector.broadcast %46 : vector<1x32xf32> to vector<8x32xf32>
      %48 = arith.mulf %38, %47 : vector<8x32xf32>
      %49 = arith.truncf %32 : vector<8x32xf32> to vector<8x32xbf16>
      %50 = arith.truncf %48 : vector<8x32xf32> to vector<8x32xbf16>
      %cst_25 = arith.constant dense<0.000000e+00> : vector<32x32xf32>
      %51 = tpu.matmul %49, %50, %cst_25 {dimension_numbers = #tpu.dot_dimension_numbers<[0], [0], [1], [1], [0, 1, 1, 1], [], []>} : vector<8x32xbf16>, vector<8x32xbf16>, vector<32x32xf32> -> vector<32x32xf32>
      %cst_26 = arith.constant 1.250000e-01 : f32
      %52 = vector.broadcast %cst_26 : f32 to vector<32x32xf32>
      %53 = arith.mulf %51, %52 : vector<32x32xf32>
      %54 = tpu.iota {dimensions = array<i32: 0>} : vector<32x32xi32>
      %55 = tpu.iota {dimensions = array<i32: 1>} : vector<32x32xi32>
      %56 = arith.cmpi eq, %54, %55 : vector<32x32xi32>
      %cst_27 = arith.constant 1.000000e+00 : f32
      %57 = vector.broadcast %cst_27 : f32 to vector<32x32xf32>
      %58 = arith.subf %53, %57 : vector<32x32xf32>
      %59 = arith.mulf %58, %58 : vector<32x32xf32>
      %cst_28 = arith.constant 3.125000e-02 : f32
      %60 = vector.broadcast %cst_28 : f32 to vector<32x32xf32>
      %61 = arith.mulf %59, %60 : vector<32x32xf32>
      %62 = arith.mulf %53, %53 : vector<32x32xf32>
      %cst_29 = arith.constant 1.00806456E-5 : f32
      %63 = vector.broadcast %cst_29 : f32 to vector<32x32xf32>
      %64 = arith.mulf %62, %63 : vector<32x32xf32>
      %65 = arith.select %56, %61, %64 : vector<32x32xi1>, vector<32x32xf32>
      %66 = vector.shape_cast %65 : vector<32x32xf32> to vector<1x32x32xf32>
      %cst_30 = arith.constant dense<0.000000e+00> : vector<1xf32>
      %67 = vector.multi_reduction <add>, %66, %cst_30 [1, 2] : vector<1x32x32xf32> to vector<1xf32>
      %68 = vector.shape_cast %67 : vector<1xf32> to vector<1x1x1xf32>
      %69 = vector.extract %68[0, 0, 0] : f32 from vector<1x1x1xf32>
      %c0_31 = arith.constant 0 : index
      %c0_32 = arith.constant 0 : index
      %70 = memref.load %arg5[%c0_31, %c0_32] : memref<1x1xf32, #tpu.memory_space<smem>>
      memref.store %69, %arg5[%c0_31, %c0_32] : memref<1x1xf32, #tpu.memory_space<smem>>
    } else {
    }
    return
  }
  func.func @transform_0(%arg0: i32) -> (i32, i32) {
    %c0_i32 = arith.constant 0 : i32
    %c0_i32_0 = arith.constant 0 : i32
    %c0_i32_1 = arith.constant 0 : i32
    return %c0_i32, %c0_i32_0 : i32, i32
  }
  func.func @transform_1(%arg0: i32) -> (i32, i32) {
    %c0_i32 = arith.constant 0 : i32
    %c0_i32_0 = arith.constant 0 : i32
    return %c0_i32, %arg0 : i32, i32
  }
  func.func @transform_2(%arg0: i32) -> (i32, i32) {
    %c0_i32 = arith.constant 0 : i32
    %c0_i32_0 = arith.constant 0 : i32
    return %arg0, %c0_i32 : i32, i32
  }
  func.func @transform_3(%arg0: i32) -> (i32, i32) {
    %c0_i32 = arith.constant 0 : i32
    %c0_i32_0 = arith.constant 0 : i32
    %c0_i32_1 = arith.constant 0 : i32
    return %c0_i32, %c0_i32_0 : i32, i32
  }
  func.func @transform_4(%arg0: i32) -> (i32, i32) {
    %c0_i32 = arith.constant 0 : i32
    %c0_i32_0 = arith.constant 0 : i32
    %c0_i32_1 = arith.constant 0 : i32
    return %c0_i32, %c0_i32_0 : i32, i32
  }
}

</mosaic_0001>

<llo_original>
// kernel: tpu_custom_call.1
$region0: #{tpu_custom_call.1}
  #allocation0 [shape = 'u32[]', space=smem, size = 0x4, offset = 0x4, fixed_abs, tag = 'smem constant byte address 0x4 - core index']
  #allocation1 [shape = 'u32[144,128]{1,0:T(1,128)}', space=vmem, size = 0x12000, scoped, tag = 'internal scratch']
  #allocation2 [shape = 'f32[8,32]{1,0:T(8,128)}', space=vmem, size = 0x1000, scoped, tag = 'scratch operand']
  %s0 = inlined_call_operand.vmem [shape: f32[8,32], index: 0, kind: input, shape index: {}]
  %s1 = inlined_call_operand.vmem [shape: bf16[8,1024], index: 1, kind: input, shape index: {}]
  %s2 = inlined_call_operand.vmem [shape: bf16[1024,32], index: 2, kind: input, shape index: {}]
  %s3 = inlined_call_operand.vmem [shape: f32[1,32], index: 3, kind: input, shape index: {}]
  %s4 = inlined_call_operand.hbm [shape: f32[1,1], index: 4, kind: output, shape index: {}]
  %s5 = sld [smem:[#allocation0]]
  $region57: #{tpu_custom_call.1} parent=0
    _
  %s7 = ssub.s32 1, %s5
  %s8 = scalar_select 0, %s7, %s5
  $region1: #{tpu_custom_call.1} parent=0
    #allocation3 [shape = 'u8[512]{0}', space=smem, size = 0x200, scoped, tag = 'output window, operand 0, single buffered']
    #allocation4 [shape = 's32[2]{0}', space=sflag, size = 0x8, scoped, tag = 'scoped memory for tpu_custom_call.1']
    %9 = vsyncpa [#allocation4], 0
    loop: start=0, step=1, limit=6
    $region2: #{tpu_custom_call.1} parent=1 // loop_pre_header
      _
    $region3: #{tpu_custom_call.1} parent=1 // loop_header
      %s11 = sphi 0, %s15
      %p12 = scmp.ge.s32.totalorder %s11, 6
      %s19 = sphi 0, %s19
      %s21 = sphi 0, %s19
      %s22 = sphi 0, %s21
      %s36 = sphi 0, %s22
      %s42 = sphi 0, %s44
      %s45 = sphi 0, %s42
      %s46 = sphi 0, %s45
      %s62 = sphi 0, %s46
      %s68 = sphi 0, %s70
      %s71 = sphi 0, %s68
      %s72 = sphi 0, %s71
      %s88 = sphi 0, %s72
      %s92 = sphi 0, %s92
      %s94 = sphi 0, %s92
      %s95 = sphi 0, %s94
      %s109 = sphi 0, %s95
      %s113 = sphi 0, %s113
      %s115 = sphi 0, %s113
      %s116 = sphi 0, %s115
      %s130 = sphi 0, %s116
    $region4: #{tpu_custom_call.1} parent=1 // loop_header_branch
      %14 = sbr.rel (%p12) target = $region8
    $region5: #{tpu_custom_call.1} parent=1 // loop_body
      %s16 = ssub.s32 %s11, 1
      %s17 = ssub.s32 %s11, 2
      %s18 = sadd.s32 %s11, 1
      %s20 = sadd.s32 %s19, 1
      %p23 = scmp.eq.s32.totalorder %s11, 3
      %p24 = scmp.ne.s32.totalorder %s19, %s21
      %p25 = scmp.eq.s32.totalorder %s11, 0
      %p26 = por %p24, %p25
      %p27 = scmp.ne.s32.totalorder %s19, %s21
      %p28 = scmp.eq.s32.totalorder %s16, 3
      %p29 = por %p27, %p28
      %p30 = scmp.ne.s32.totalorder %s21, %s22
      %p31 = scmp.eq.s32.totalorder %s16, 0
      %p32 = por %p30, %p31
      %p33 = scmp.ne.s32.totalorder %s21, %s22
      %p34 = scmp.eq.s32.totalorder %s17, 3
      %p35 = por %p33, %p34
      %p37 = scmp.ne.s32.totalorder %s22, %s36
      %p38 = scmp.eq.s32.totalorder %s17, 0
      %p39 = por %p37, %p38
      %s40 = ssub.s32 %s11, %s18
      %p41 = scmp.eq.s32.totalorder %s40, 0
      %s43 = sadd.s32 %s42, 1
      %s44 = scalar_select %p41, %s42, %s43
      %p47 = pneg %p41
      %p48 = scmp.eq.s32.totalorder %s11, 3
      %p49 = por %p47, %p48
      %p50 = scmp.ne.s32.totalorder %s42, %s45
      %p51 = scmp.eq.s32.totalorder %s11, 0
      %p52 = por %p50, %p51
      %p53 = scmp.ne.s32.totalorder %s42, %s45
      %p54 = scmp.eq.s32.totalorder %s16, 3
      %p55 = por %p53, %p54
      %p56 = scmp.ne.s32.totalorder %s45, %s46
      %p57 = scmp.eq.s32.totalorder %s16, 0
      %p58 = por %p56, %p57
      %p59 = scmp.ne.s32.totalorder %s45, %s46
      %p60 = scmp.eq.s32.totalorder %s17, 3
      %p61 = por %p59, %p60
      %p63 = scmp.ne.s32.totalorder %s46, %s62
      %p64 = scmp.eq.s32.totalorder %s17, 0
      %p65 = por %p63, %p64
      %s66 = ssub.s32 %s11, %s18
      %p67 = scmp.eq.s32.totalorder %s66, 0
      %s69 = sadd.s32 %s68, 1
      %s70 = scalar_select %p67, %s68, %s69
      %p73 = pneg %p67
      %p74 = scmp.eq.s32.totalorder %s11, 3
      %p75 = por %p73, %p74
      %p76 = scmp.ne.s32.totalorder %s68, %s71
      %p77 = scmp.eq.s32.totalorder %s11, 0
      %p78 = por %p76, %p77
      %p79 = scmp.ne.s32.totalorder %s68, %s71
      %p80 = scmp.eq.s32.totalorder %s16, 3
      %p81 = por %p79, %p80
      %p82 = scmp.ne.s32.totalorder %s71, %s72
      %p83 = scmp.eq.s32.totalorder %s16, 0
      %p84 = por %p82, %p83
      %p85 = scmp.ne.s32.totalorder %s71, %s72
      %p86 = scmp.eq.s32.totalorder %s17, 3
      %p87 = por %p85, %p86
      %p89 = scmp.ne.s32.totalorder %s72, %s88
      %p90 = scmp.eq.s32.totalorder %s17, 0
      %p91 = por %p89, %p90
      %s93 = sadd.s32 %s92, 1
      %p96 = scmp.eq.s32.totalorder %s11, 3
      %p97 = scmp.ne.s32.totalorder %s92, %s94
      %p98 = scmp.eq.s32.totalorder %s11, 0
      %p99 = por %p97, %p98
      %p100 = scmp.ne.s32.totalorder %s92, %s94
      %p101 = scmp.eq.s32.totalorder %s16, 3
      %p102 = por %p100, %p101
      %p103 = scmp.ne.s32.totalorder %s94, %s95
      %p104 = scmp.eq.s32.totalorder %s16, 0
      %p105 = por %p103, %p104
      %p106 = scmp.ne.s32.totalorder %s94, %s95
      %p107 = scmp.eq.s32.totalorder %s17, 3
      %p108 = por %p106, %p107
      %p110 = scmp.ne.s32.totalorder %s95, %s109
      %p111 = scmp.eq.s32.totalorder %s17, 0
      %p112 = por %p110, %p111
      %s114 = sadd.s32 %s113, 1
      %p117 = scmp.eq.s32.totalorder %s11, 3
      %p118 = scmp.ne.s32.totalorder %s113, %s115
      %p119 = scmp.eq.s32.totalorder %s11, 0
      %p120 = por %p118, %p119
      %p121 = scmp.ne.s32.totalorder %s113, %s115
      %p122 = scmp.eq.s32.totalorder %s16, 3
      %p123 = por %p121, %p122
      %p124 = scmp.ne.s32.totalorder %s115, %s116
      %p125 = scmp.eq.s32.totalorder %s16, 0
      %p126 = por %p124, %p125
      %p127 = scmp.ne.s32.totalorder %s115, %s116
      %p128 = scmp.eq.s32.totalorder %s17, 3
      %p129 = por %p127, %p128
      %p131 = scmp.ne.s32.totalorder %s116, %s130
      %p132 = scmp.eq.s32.totalorder %s17, 0
      %p133 = por %p131, %p132
      %p134 = scmp.le.s32.totalorder 1, %s11
      %p135 = scmp.lt.s32.totalorder %s11, 5
      %p136 = pnand %p134, %p135
      %p137 = pneg %p136
      // Predicated region
      $region9: #{tpu_custom_call.1} parent=5 // pred_check
        _
      $region10: #{tpu_custom_call.1} parent=5 // pred_check_branch
        %139 = sbr.rel (%p136) target = $region12
      $region11: #{tpu_custom_call.1} parent=5 // pred_region
        %s140 = ssub.s32 %s11, 1
        // Predicated region
        $region13: #{tpu_custom_call.1} parent=11 // pred_check
          %p141 = pneg %p32
        $region14: #{tpu_custom_call.1} parent=11 // pred_check_branch
          %143 = sbr.rel (%p141) target = $region16
        $region15: #{tpu_custom_call.1} parent=11 // pred_region
          _
        $region16: #{tpu_custom_call.1} parent=11 // pred_fallthru
          _
        // Predicated region
        $region17: #{tpu_custom_call.1} parent=11 // pred_check
          %p144 = pneg %p105
        $region18: #{tpu_custom_call.1} parent=11 // pred_check_branch
          %146 = sbr.rel (%p144) target = $region20
        $region19: #{tpu_custom_call.1} parent=11 // pred_region
          _
        $region20: #{tpu_custom_call.1} parent=11 // pred_fallthru
          _
      $region12: #{tpu_custom_call.1} parent=5 // pred_fallthru
        _
      %p147 = scmp.lt.s32.totalorder %s11, 4
      // Predicated region
      $region21: #{tpu_custom_call.1} parent=5 // pred_check
        %p148 = pneg %p147
      $region22: #{tpu_custom_call.1} parent=5 // pred_check_branch
        %150 = sbr.rel (%p148) target = $region24
      $region23: #{tpu_custom_call.1} parent=5 // pred_region
        // Predicated region
        $region25: #{tpu_custom_call.1} parent=23 // pred_check
          %p151 = pneg %p52
        $region26: #{tpu_custom_call.1} parent=23 // pred_check_branch
          %153 = sbr.rel (%p151) target = $region28
        $region27: #{tpu_custom_call.1} parent=23 // pred_region
          %s154 = smul.u32 2, %s11
          %p155 = scmp.lt.s32.totalorder %s154, 7
          %s156 = scalar_select %p155, %s154, 7
          %s157 = smul.addr %s156, 4
          %s158 = scalar_lea.vmem %s1, %s157
          %s159 = smul.u32 2, %s11
        $region28: #{tpu_custom_call.1} parent=23 // pred_fallthru
          _
        // Predicated region
        $region29: #{tpu_custom_call.1} parent=23 // pred_check
          %p160 = pneg %p78
        $region30: #{tpu_custom_call.1} parent=23 // pred_check_branch
          %162 = sbr.rel (%p160) target = $region32
        $region31: #{tpu_custom_call.1} parent=23 // pred_region
          %s163 = smul.u32 32, %s11
          %p164 = scmp.lt.s32.totalorder %s163, 127
          %s165 = scalar_select %p164, %s163, 127
          %s166 = smul.addr %s165, 4
          %s167 = scalar_lea.vmem %s2, %s166
          %s168 = smul.u32 32, %s11
        $region32: #{tpu_custom_call.1} parent=23 // pred_fallthru
          _
      $region24: #{tpu_custom_call.1} parent=5 // pred_fallthru
        _
      %p169 = scmp.le.s32.totalorder 1, %s11
      %p170 = scmp.lt.s32.totalorder %s11, 5
      %p171 = pnand %p169, %p170
      %p172 = pneg %p171
      // Predicated region
      $region33: #{tpu_custom_call.1} parent=5 // pred_check
        _
      $region34: #{tpu_custom_call.1} parent=5 // pred_check_branch
        %174 = sbr.rel (%p171) target = $region36
      $region35: #{tpu_custom_call.1} parent=5 // pred_region
        %s175 = ssub.s32 %s11, 1
        %p176 = pneg %p32
        %p177 = pneg %p29
        %s178 = smul.u32 2, %s16
        %p179 = scmp.lt.s32.totalorder %s178, 7
        %s180 = scalar_select %p179, %s178, 7
        %s181 = smul.addr %s180, 4
        %s182 = scalar_lea.vmem %s1, %s181
        %p183 = pneg %p58
        %p184 = pneg %p55
        %s185 = smul.u32 32, %s16
        %p186 = scmp.lt.s32.totalorder %s185, 127
        %s187 = scalar_select %p186, %s185, 127
        %s188 = smul.addr %s187, 4
        %s189 = scalar_lea.vmem %s2, %s188
        %p190 = pneg %p84
        %p191 = pneg %p81
        %p192 = pneg %p105
        %p193 = pneg %p102
        %p194 = pneg %p126
        %p195 = pneg %p123
        %s196 = smul.u32 2, %s16
        %p197 = scmp.lt.s32.totalorder %s196, 7
        %s198 = scalar_select %p197, %s196, 7
        %s199 = smul.addr %s198, 4
        %s200 = scalar_lea.vmem %s1, %s199
        %s201 = smul.u32 2, %s16
        %s202 = smul.u32 32, %s16
        %p203 = scmp.lt.s32.totalorder %s202, 127
        %s204 = scalar_select %p203, %s202, 127
        %s205 = smul.addr %s204, 4
        %s206 = scalar_lea.vmem %s2, %s205
        %s207 = smul.u32 32, %s16
        %p209 = scmp.eq.s32.totalorder %s16, 0
        // Predicated region
        $region37: #{tpu_custom_call.1} parent=35 // pred_check
          %p210 = pneg %p209
        $region38: #{tpu_custom_call.1} parent=35 // pred_check_branch
          %212 = sbr.rel (%p210) target = $region40
        $region39: #{tpu_custom_call.1} parent=35 // pred_region
          %vm213 = vcmask 261120
          %214 = vst.msk [vmem:[#allocation2] sm:$0xff] %vm213, 0.0
        $region40: #{tpu_custom_call.1} parent=35 // pred_fallthru
          _
        %v215 = vld [vmem:[#allocation2] sm:$0xff]
        %v216 = vld [vmem:[%s200] sm:$0xff]
        %v217 = vld [vmem:[%s206] sm:$0xf]
        %v218 = vld [vmem:[%s206 + $0x4] sm:$0xf]
        %v219 = vld [vmem:[%s206 + $0x8] sm:$0xf]
        %v220 = vld [vmem:[%s206 + $0xc] sm:$0xf]
        %v221 = vld [vmem:[%s206 + $0x10] sm:$0xf]
        %v222 = vld [vmem:[%s206 + $0x14] sm:$0xf]
        %v223 = vld [vmem:[%s206 + $0x18] sm:$0xf]
        %v224 = vld [vmem:[%s206 + $0x1c] sm:$0xf]
        %v225 = vld [vmem:[%s206 + $0x20] sm:$0xf]
        %v226 = vld [vmem:[%s206 + $0x24] sm:$0xf]
        %v227 = vld [vmem:[%s206 + $0x28] sm:$0xf]
        %v228 = vld [vmem:[%s206 + $0x2c] sm:$0xf]
        %v229 = vld [vmem:[%s206 + $0x30] sm:$0xf]
        %v230 = vld [vmem:[%s206 + $0x34] sm:$0xf]
        %v231 = vld [vmem:[%s206 + $0x38] sm:$0xf]
        %v232 = vld [vmem:[%s206 + $0x3c] sm:$0xf]
        %v233 = vld [vmem:[%s206 + $0x40] sm:$0xf]
        %v234 = vld [vmem:[%s206 + $0x44] sm:$0xf]
        %v235 = vld [vmem:[%s206 + $0x48] sm:$0xf]
        %v236 = vld [vmem:[%s206 + $0x4c] sm:$0xf]
        %v237 = vld [vmem:[%s206 + $0x50] sm:$0xf]
        %v238 = vld [vmem:[%s206 + $0x54] sm:$0xf]
        %v239 = vld [vmem:[%s206 + $0x58] sm:$0xf]
        %v240 = vld [vmem:[%s206 + $0x5c] sm:$0xf]
        %v241 = vld [vmem:[%s206 + $0x60] sm:$0xf]
        %v242 = vld [vmem:[%s206 + $0x64] sm:$0xf]
        %v243 = vld [vmem:[%s206 + $0x68] sm:$0xf]
        %v244 = vld [vmem:[%s206 + $0x6c] sm:$0xf]
        %v245 = vld [vmem:[%s206 + $0x70] sm:$0xf]
        %v246 = vld [vmem:[%s206 + $0x74] sm:$0xf]
        %v247 = vld [vmem:[%s206 + $0x78] sm:$0xf]
        %v248 = vld [vmem:[%s206 + $0x7c] sm:$0xf]
        %v250 = vunpack.c.l.b16 %v216
        %v251 = vunpack.c.h.b16 %v216
        %v252 = vpack.c.b16 %v250, %v250
        %v253 = vpack.c.b16 %v251, %v251
        %v288 = vunpack.c.l.b16 %v217
        %v289 = vunpack.c.l.b16 %v218
        %v290 = vunpack.c.l.b16 %v219
        %v291 = vunpack.c.l.b16 %v220
        %v292 = vunpack.c.l.b16 %v221
        %v293 = vunpack.c.l.b16 %v222
        %v294 = vunpack.c.l.b16 %v223
        %v295 = vunpack.c.l.b16 %v224
        %v296 = vunpack.c.l.b16 %v225
        %v297 = vunpack.c.l.b16 %v226
        %v298 = vunpack.c.l.b16 %v227
        %v299 = vunpack.c.l.b16 %v228
        %v300 = vunpack.c.l.b16 %v229
        %v301 = vunpack.c.l.b16 %v230
        %v302 = vunpack.c.l.b16 %v231
        %v303 = vunpack.c.l.b16 %v232
        %v304 = vunpack.c.l.b16 %v233
        %v305 = vunpack.c.l.b16 %v234
        %v306 = vunpack.c.l.b16 %v235
        %v307 = vunpack.c.l.b16 %v236
        %v308 = vunpack.c.l.b16 %v237
        %v309 = vunpack.c.l.b16 %v238
        %v310 = vunpack.c.l.b16 %v239
        %v311 = vunpack.c.l.b16 %v240
        %v312 = vunpack.c.l.b16 %v241
        %v313 = vunpack.c.l.b16 %v242
        %v314 = vunpack.c.l.b16 %v243
        %v315 = vunpack.c.l.b16 %v244
        %v316 = vunpack.c.l.b16 %v245
        %v317 = vunpack.c.l.b16 %v246
        %v318 = vunpack.c.l.b16 %v247
        %v319 = vunpack.c.l.b16 %v248
        %v320 = vpack.c.b16 %v289, %v288
        %v321 = vpack.c.b16 %v291, %v290
        %v322 = vpack.c.b16 %v293, %v292
        %v323 = vpack.c.b16 %v295, %v294
        %v324 = vpack.c.b16 %v297, %v296
        %v325 = vpack.c.b16 %v299, %v298
        %v326 = vpack.c.b16 %v301, %v300
        %v327 = vpack.c.b16 %v303, %v302
        %v328 = vpack.c.b16 %v305, %v304
        %v329 = vpack.c.b16 %v307, %v306
        %v330 = vpack.c.b16 %v309, %v308
        %v331 = vpack.c.b16 %v311, %v310
        %v332 = vpack.c.b16 %v313, %v312
        %v333 = vpack.c.b16 %v315, %v314
        %v334 = vpack.c.b16 %v317, %v316
        %v335 = vpack.c.b16 %v319, %v318
        %352 = vmatprep.subr.bf16.mxu0 0
        %353 = vmatpush1.bf16.msra.mxu0 %v327
        %354 = vmatprep.subr.bf16.mxu0 0
        %355 = vmatpush1.bf16.msra.mxu0 %v326
        %356 = vmatprep.subr.bf16.mxu0 0
        %357 = vmatpush1.bf16.msra.mxu0 %v325
        %358 = vmatprep.subr.bf16.mxu0 0
        %359 = vmatpush1.bf16.msra.mxu0 %v324
        %360 = vmatprep.subr.bf16.mxu0 0
        %361 = vmatpush1.bf16.msra.mxu0 %v323
        %362 = vmatprep.subr.bf16.mxu0 0
        %363 = vmatpush1.bf16.msra.mxu0 %v322
        %364 = vmatprep.subr.bf16.mxu0 0
        %365 = vmatpush1.bf16.msra.mxu0 %v321
        %366 = vmatprep.subr.bf16.mxu0 0
        %367 = vmatpush1.bf16.msra.mxu0 %v320
        %368 = vmatprep.subr.bf16.mxu0 0
        %369 = vmatpush2.bf16.msra.mxu0 %v335
        %370 = vmatprep.subr.bf16.mxu0 0
        %371 = vmatpush2.bf16.msra.mxu0 %v334
        %372 = vmatprep.subr.bf16.mxu0 0
        %373 = vmatpush2.bf16.msra.mxu0 %v333
        %374 = vmatprep.subr.bf16.mxu0 0
        %375 = vmatpush2.bf16.msra.mxu0 %v332
        %376 = vmatprep.subr.bf16.mxu0 0
        %377 = vmatpush2.bf16.msra.mxu0 %v331
        %378 = vmatprep.subr.bf16.mxu0 0
        %379 = vmatpush2.bf16.msra.mxu0 %v330
        %380 = vmatprep.subr.bf16.mxu0 0
        %381 = vmatpush2.bf16.msra.mxu0 %v329
        %382 = vmatprep.subr.bf16.mxu0 0
        %383 = vmatpush2.bf16.msra.mxu0 %v328
        %384 = vmatprep.mubr.bf16.mxu0 %v253
        %385 = vmatmul.mubr.bf16.gmra.mxu0 %v252
        %v386 = vpop.f32.mrf.mxu0
        %v387 = vadd.f32 0.0, %v386
        %v388 = vpop.f32.mrf.mxu0
        %v389 = vpop.f32.mrf.mxu0
        %v390 = vpop.f32.mrf.mxu0
        %391 = vdwg.mxu0
        %v392 = vadd.f32 %v215, %v387
        %vm393 = vcmask 261120
        %394 = vst.msk [vmem:[#allocation2] sm:$0xff] %vm393, %v392
        %p395 = scmp.eq.s32.totalorder %s16, 3
        // Predicated region
        $region41: #{tpu_custom_call.1} parent=35 // pred_check
          %p396 = pneg %p395
        $region42: #{tpu_custom_call.1} parent=35 // pred_check_branch
          %398 = sbr.rel (%p396) target = $region44
        $region43: #{tpu_custom_call.1} parent=35 // pred_region
          %v399 = vld [vmem:[%s0] sm:$0xff]
          %v400 = vld [vmem:[#allocation2] sm:$0xff]
          %v401 = vld [vmem:[%s3] sm:$0x1]
          %v403 = vlaneseq
          %v404 = vshrl.u32 %v403, 7
          %v405 = vsub.s32 0, %v404
          %v406 = vrot.slane %v401, %v405
          %v408 = vadd.f32 %v400, %v406
          %v409 = vsel %vm393, %v399, 0.0
          %v410 = vrot.slane %v409, 4
          %v411 = vadd.f32 %v409, %v410
          %v412 = vrot.slane %v411, 2
          %v413 = vadd.f32 %v411, %v412
          %v414 = vrot.slane %v413, 1
          %v415 = vadd.f32 %v413, %v414
          %v416 = vrcp.pop 8.0
          %v417 = vmul.f32 %v415, %v416
          %v418 = vsub.f32 %v399, %v417
          %v419 = vmul.f32 %v418, %v418
          %v420 = vsel %vm393, %v419, 0.0
          %v421 = vrot.slane %v420, 4
          %v422 = vadd.f32 %v420, %v421
          %v423 = vrot.slane %v422, 2
          %v424 = vadd.f32 %v422, %v423
          %v425 = vrot.slane %v424, 1
          %v426 = vadd.f32 %v424, %v425
          %v427 = vmul.f32 %v426, %v416
          %v428 = vadd.f32 %v427, 1e-05
          %v429 = vrsqrt.pop %v428
          %v430 = vmul.f32 %v418, %v429
          %v431 = vsel %vm393, %v408, 0.0
          %v432 = vrot.slane %v431, 4
          %v433 = vadd.f32 %v431, %v432
          %v434 = vrot.slane %v433, 2
          %v435 = vadd.f32 %v433, %v434
          %v436 = vrot.slane %v435, 1
          %v437 = vadd.f32 %v435, %v436
          %v438 = vmul.f32 %v437, %v416
          %v439 = vsub.f32 %v408, %v438
          %v440 = vmul.f32 %v439, %v439
          %v441 = vsel %vm393, %v440, 0.0
          %v442 = vrot.slane %v441, 4
          %v443 = vadd.f32 %v441, %v442
          %v444 = vrot.slane %v443, 2
          %v445 = vadd.f32 %v443, %v444
          %v446 = vrot.slane %v445, 1
          %v447 = vadd.f32 %v445, %v446
          %v448 = vmul.f32 %v447, %v416
          %v449 = vadd.f32 %v448, 1e-05
          %v450 = vrsqrt.pop %v449
          %v451 = vmul.f32 %v439, %v450
          %v452 = vpack.c.bf16 %v430, %v430
          %v453 = vpack.c.bf16 %v451, %v451
          %454 = vxpose.xlu0.c.b16.start [1/8] %v452, 128
          %455 = vxpose.xlu0.c.b16.cont [2/8] 0, 128
          %456 = vxpose.xlu0.c.b16.cont [3/8] 0, 128
          %457 = vxpose.xlu0.c.b16.cont [4/8] 0, 128
          %458 = vxpose.xlu0.c.b16.cont [5/8] 0, 128
          %459 = vxpose.xlu0.c.b16.cont [6/8] 0, 128
          %460 = vxpose.xlu0.c.b16.cont [7/8] 0, 128
          %461 = vxpose.xlu0.c.b16.end [8/8] 0, 128
          %v462 = vpop.trf.xlu0
          %v463 = vpop.trf.xlu0
          %v464 = vpop.trf.xlu0
          %v465 = vpop.trf.xlu0
          %v466 = vpop.trf.xlu0
          %v467 = vpop.trf.xlu0
          %v468 = vpop.trf.xlu0
          %v469 = vpop.trf.xlu0
          %vm470 = vcmask 64512
          %v472 = vsel %vm470, %v462, 0
          %v475 = vsel %vm470, %v463, 0
          %vm477 = vcmask 1043456
          %v479 = vsel %vm477, %v453, 0
          %481 = vmatprep.subr.bf16.mxu0 0
          %482 = vmatpush1.bf16.msra.mxu0 0
          %483 = vmatprep.subr.bf16.mxu0 0
          %484 = vmatpush1.bf16.msra.mxu0 0
          %485 = vmatprep.subr.bf16.mxu0 0
          %486 = vmatpush1.bf16.msra.mxu0 0
          %487 = vmatprep.subr.bf16.mxu0 0
          %488 = vmatpush1.bf16.msra.mxu0 0
          %489 = vmatprep.subr.bf16.mxu0 0
          %490 = vmatpush1.bf16.msra.mxu0 0
          %491 = vmatprep.subr.bf16.mxu0 0
          %492 = vmatpush1.bf16.msra.mxu0 0
          %493 = vmatprep.subr.bf16.mxu0 0
          %494 = vmatpush1.bf16.msra.mxu0 0
          %495 = vmatprep.subr.bf16.mxu0 0
          %496 = vmatpush1.bf16.msra.mxu0 %v479
          %497 = vmatprep.subr.bf16.mxu0 0
          %498 = vmatpush2.bf16.msra.mxu0 0
          %499 = vmatprep.subr.bf16.mxu0 0
          %500 = vmatpush2.bf16.msra.mxu0 0
          %501 = vmatprep.subr.bf16.mxu0 0
          %502 = vmatpush2.bf16.msra.mxu0 0
          %503 = vmatprep.subr.bf16.mxu0 0
          %504 = vmatpush2.bf16.msra.mxu0 0
          %505 = vmatprep.subr.bf16.mxu0 0
          %506 = vmatpush2.bf16.msra.mxu0 0
          %507 = vmatprep.subr.bf16.mxu0 0
          %508 = vmatpush2.bf16.msra.mxu0 0
          %509 = vmatprep.subr.bf16.mxu0 0
          %510 = vmatpush2.bf16.msra.mxu0 0
          %511 = vmatprep.subr.bf16.mxu0 0
          %512 = vmatpush2.bf16.msra.mxu0 0
          %513 = vmatprep.mubr.bf16.mxu0 0
          %514 = vmatmul.mubr.bf16.gmra.mxu0 %v472
          %v515 = vpop.f32.mrf.mxu0
          %v516 = vadd.f32 0.0, %v515
          %v517 = vpop.f32.mrf.mxu0
          %v518 = vpop.f32.mrf.mxu0
          %v519 = vadd.f32 0.0, %v518
          %v520 = vpop.f32.mrf.mxu0
          %521 = vmatprep.mubr.bf16.mxu0 0
          %522 = vmatmul.mubr.bf16.gmra.mxu0 %v475
          %v523 = vpop.f32.mrf.mxu0
          %v524 = vadd.f32 0.0, %v523
          %v525 = vpop.f32.mrf.mxu0
          %v526 = vpop.f32.mrf.mxu0
          %v527 = vadd.f32 0.0, %v526
          %v528 = vpop.f32.mrf.mxu0
          %529 = vdwg.mxu0
          %v530 = vmul.f32 %v516, 0.125
          %v531 = vmul.f32 %v519, 0.125
          %v532 = vmul.f32 %v524, 0.125
          %v533 = vmul.f32 %v527, 0.125
          %v534 = vlaneseq
          %v535 = vshrl.u32 %v534, 7
          %v536 = vadd.s32 %v535, 8
          %v537 = vadd.s32 %v535, 16
          %v538 = vadd.s32 %v535, 24
          %v539 = vlaneseq
          %v540 = vand.u32 %v539, 127
          %vm541 = vcmp.eq.s32.totalorder %v535, %v540
          %vm542 = vcmp.eq.s32.totalorder %v536, %v540
          %vm543 = vcmp.eq.s32.totalorder %v537, %v540
          %vm544 = vcmp.eq.s32.totalorder %v538, %v540
          %v545 = vsub.f32 %v530, 1.0
          %v546 = vsub.f32 %v531, 1.0
          %v547 = vsub.f32 %v532, 1.0
          %v548 = vsub.f32 %v533, 1.0
          %v549 = vmul.f32 %v545, %v545
          %v550 = vmul.f32 %v546, %v546
          %v551 = vmul.f32 %v547, %v547
          %v552 = vmul.f32 %v548, %v548
          %v553 = vmul.f32 %v549, 0.03125
          %v554 = vmul.f32 %v550, 0.03125
          %v555 = vmul.f32 %v551, 0.03125
          %v556 = vmul.f32 %v552, 0.03125
          %v557 = vmul.f32 %v530, %v530
          %v558 = vmul.f32 %v531, %v531
          %v559 = vmul.f32 %v532, %v532
          %v560 = vmul.f32 %v533, %v533
          %v561 = vmul.f32 %v557, 1.0080646e-05
          %v562 = vmul.f32 %v558, 1.0080646e-05
          %v563 = vmul.f32 %v559, 1.0080646e-05
          %v564 = vmul.f32 %v560, 1.0080646e-05
          %v565 = vsel %vm541, %v553, %v561
          %v566 = vsel %vm542, %v554, %v562
          %v567 = vsel %vm543, %v555, %v563
          %v568 = vsel %vm544, %v556, %v564
          %v569 = vsel %vm393, %v565, 0.0
          %v570 = vsel %vm393, %v566, 0.0
          %v571 = vadd.f32 %v569, %v570
          %v572 = vsel %vm393, %v567, 0.0
          %v573 = vadd.f32 %v571, %v572
          %v574 = vsel %vm393, %v568, 0.0
          %v575 = vadd.f32 %v573, %v574
          %576 = vadd.xlane.f32.xlu0 %v575
          %v577 = vpop.xlane.xlu0 %576
          %v578 = vrot.slane %v577, 4
          %v579 = vadd.f32 %v577, %v578
          %v580 = vrot.slane %v579, 2
          %v581 = vadd.f32 %v579, %v580
          %v582 = vrot.slane %v581, 1
          %v583 = vadd.f32 %v581, %v582
          %s584 = vtos %v583
          %s585 = scalar_lea.smem [#allocation3], 0
          %586 = sst [smem:[%s585]] %s584
        $region44: #{tpu_custom_call.1} parent=35 // pred_fallthru
          _
        // Predicated region
        $region45: #{tpu_custom_call.1} parent=35 // pred_check
          %p587 = pneg %p123
        $region46: #{tpu_custom_call.1} parent=35 // pred_check_branch
          %589 = sbr.rel (%p587) target = $region48
        $region47: #{tpu_custom_call.1} parent=35 // pred_region
          %s591 = ssub.s32 16, 16
          %592 = vsyncadd [#allocation4], %s591
          %595 = dma.smem_to_hbm [#allocation3], 16, %s4, [#allocation4]
        $region48: #{tpu_custom_call.1} parent=35 // pred_fallthru
          _
        // Predicated region
        $region49: #{tpu_custom_call.1} parent=35 // pred_check
          %p596 = pneg %p123
        $region50: #{tpu_custom_call.1} parent=35 // pred_check_branch
          %598 = sbr.rel (%p596) target = $region52
        $region51: #{tpu_custom_call.1} parent=35 // pred_region
          %599 = dma.done [#allocation4], 16
        $region52: #{tpu_custom_call.1} parent=35 // pred_fallthru
          _
        %600 = sfence
      $region36: #{tpu_custom_call.1} parent=5 // pred_fallthru
        _
      %p601 = scmp.le.s32.totalorder 2, %s11
      // Predicated region
      $region53: #{tpu_custom_call.1} parent=5 // pred_check
        %p602 = pneg %p601
      $region54: #{tpu_custom_call.1} parent=5 // pred_check_branch
        %604 = sbr.rel (%p602) target = $region56
      $region55: #{tpu_custom_call.1} parent=5 // pred_region
        %s605 = ssub.s32 %s11, 2
      $region56: #{tpu_custom_call.1} parent=5 // pred_fallthru
        _
    $region6: #{tpu_custom_call.1} parent=1 // loop_footer
      %s15 = sadd.s32 1, %s11
    $region7: #{tpu_custom_call.1} parent=1 // loop_footer_branch
      %10 = sbr.rel target = $region3
    $region8: #{tpu_custom_call.1} parent=1 // loop_exit
      _
    %606 = vsyncpa [#allocation4], 1
    %s607 = scalar_lea.sflag [#allocation4], 1
    %608 = vsyncpa %s607, 1

</llo_original>
